<compile_context>
chip_gen: v6e
topology: v6e:2x2x1
jax: 0.10.0
libtpu: 0.0.40
codegen_flags: <defaults>
</compile_context>

<pallas_src>
import jax
import jax.numpy as jnp
from jax.experimental import pallas as pl
from jax.experimental.pallas import tpu as pltpu

LANE = 128  # pad feature / hidden / output axes to one full vreg lane width


def _round_up(n, m):
    return ((n + m - 1) // m) * m


def mlp_kernel(x_ref, wp_ref, o_ref):
    """Fused 5-layer MLP forward on one batch tile.

    x_ref:  [TB, 128]      f32 activations, columns = [features | 1.0 | zeros].
    wp_ref: [5, 128, 128]  bf16 packed weights (bias row + ones-carrier column).
    o_ref:  [TB, 128]      f32 output; valid result in column 0, rest zeros.
    """
    num_layers = wp_ref.shape[0]
    h = x_ref[...].astype(jnp.bfloat16)
    for l in range(num_layers - 1):
        h = jnp.dot(h, wp_ref[l], preferred_element_type=jnp.float32)
        h = jnp.maximum(h, 0.0).astype(jnp.bfloat16)  # carrier col stays 1.0
    o_ref[...] = jnp.dot(h, wp_ref[num_layers - 1],
                         preferred_element_type=jnp.float32)


def pack_params(params, dtype=jnp.bfloat16, d=LANE):
    """Pack [(W [in,out], b [1,out])] * L into one (L, 128, 128) slab.

    Layout per layer l (k = in_l, m = out_l):
      slab[l, :k, :m] = W_l
      slab[l,  k, :m] = b_l               (bias row: multiplied by the 1.0 carrier)
      slab[l,  k,  m] = 1.0  (l < L-1)    (re-seeds the 1.0 carrier for layer l+1)
    Everything else is exactly zero, so the padded lanes stay zero through ReLU.
    """
    n = len(params)
    slab = jnp.zeros((n, d, d), jnp.float32)
    for l, (w, b) in enumerate(params):
        k, m = w.shape
        slab = slab.at[l, :k, :m].set(w)
        slab = slab.at[l, k, :m].set(b.reshape(-1))
        if l < n - 1:
            slab = slab.at[l, k, m].set(1.0)
    return slab.astype(dtype)


def _tensorcores_per_chip():
    # v7x exposes 2 TensorCores per chip that split "parallel" grid axes;
    # v5e / v6e have one. Fall back to 1 if the device kind is unknown.
    try:
        kind = jax.devices()[0].device_kind.lower()
    except Exception:
        return 1
    return 2 if "v7" in kind else 1


def mlp_forward(x, wp, out_features=1, *, block_b=None):
    """x: [B, input_size] f32; wp: packed (5, 128, 128) slab from pack_params."""
    B, _ = x.shape
    num_layers, d, _ = wp.shape

    # Lane-dense input: append the ones column that carries the fc1 bias, then
    # zero-pad the feature axis to a full 128-lane vreg.
    x = jnp.concatenate([x, jnp.ones((B, 1), x.dtype)], axis=-1)
    x = jnp.pad(x, ((0, 0), (0, d - x.shape[1])))

    # Batch tiling: one tile per TensorCore (the grid is a sequential loop on
    # single-TC chips, split across TCs on v7x via "parallel"); cap at 256 rows
    # so activations stay vreg-resident across the 5 chained matmuls.
    if block_b is None:
        block_b = min(256, _round_up(pl.cdiv(B, _tensorcores_per_chip()), 8))
    block_b = max(8, _round_up(min(block_b, _round_up(B, 8)), 8))
    b_pad = _round_up(B, block_b)
    if b_pad != B:
        x = jnp.pad(x, ((0, b_pad - B), (0, 0)))

    out = pl.pallas_call(
        mlp_kernel,
        out_shape=jax.ShapeDtypeStruct((b_pad, d), jnp.float32),
        grid=(b_pad // block_b,),
        in_specs=[
            pl.BlockSpec((block_b, d), lambda i: (i, 0)),
            # Constant block index -> the weight slab is fetched once and stays
            # VMEM-resident across all batch tiles.
            pl.BlockSpec((num_layers, d, d), lambda i: (0, 0, 0)),
        ],
        out_specs=pl.BlockSpec((block_b, d), lambda i: (i, 0)),
        compiler_params=pltpu.CompilerParams(
            dimension_semantics=("parallel",)),   # v7x: both TCs split the batch
    )(x, wp)
    # Lane-dense store in the kernel; narrow head sliced off here.
    return out[:B, :out_features]


def init_linear(key, in_features, out_features):
    """PyTorch nn.Linear default init: U(-1/sqrt(fan_in), 1/sqrt(fan_in)).
    Weight returned pre-transposed to [in, out] for the kernel layout."""
    kw, kb = jax.random.split(key)
    bound = 1.0 / jnp.sqrt(jnp.float32(in_features))
    w = jax.random.uniform(kw, (in_features, out_features), jnp.float32,
                           minval=-bound, maxval=bound)
    b = jax.random.uniform(kb, (1, out_features), jnp.float32,
                           minval=-bound, maxval=bound)
    return w, b


if __name__ == "__main__":
    # Shapes consistent with the module:
    #   num_pm=4, pm_cov=3, vm_cov=4 -> input_size = 4*3 + 4 = 16
    #   output_categorical=False     -> output_size = 1
    batch_size = 256            # a real batch so the grid / MXU amortize the launch
    num_pm, pm_cov, vm_cov = 4, 3, 4
    input_size = num_pm * pm_cov + vm_cov
    hidden = 32
    output_size = 1
    # TODO(synk): categorical head (len(quantiles)-1 outputs) only needs
    # out_features widened; it still fits inside the 128-lane padded output.

    key = jax.random.PRNGKey(0)
    k_pm, k_vm, k1, k2, k3, k4, k5 = jax.random.split(key, 7)

    # Synthetic pm/vm states, concatenated exactly as in do_train():
    pm_states = jax.random.normal(k_pm, (batch_size, num_pm, pm_cov), jnp.float32)
    vm_states = jax.random.normal(k_vm, (batch_size, 1, vm_cov), jnp.float32)
    x = jnp.concatenate(
        [pm_states.reshape(batch_size, -1), vm_states.reshape(batch_size, -1)],
        axis=-1)

    params = [
        init_linear(k1, input_size, hidden),
        init_linear(k2, hidden, hidden),
        init_linear(k3, hidden, hidden),
        init_linear(k4, hidden, hidden),
        init_linear(k5, hidden, output_size),
    ]

    wp = pack_params(params)
    out = jax.block_until_ready(mlp_forward(x, wp, out_features=output_size))

    # Precision-matched reference: same math as the kernel (bf16 MXU operands,
    # f32 accumulation, f32 ReLU / bias).
    ref = x
    for i, (w, b) in enumerate(params):
        ref = jnp.dot(ref.astype(jnp.bfloat16), w.astype(jnp.bfloat16),
                      preferred_element_type=jnp.float32)
        ref = ref + b.astype(jnp.bfloat16).astype(jnp.float32)
        if i < len(params) - 1:
            ref = jnp.maximum(ref, 0.0)

    assert out.shape == (batch_size, output_size)
    err = float(jnp.max(jnp.abs(out - ref)))
    assert jnp.allclose(out, ref, atol=1e-4, rtol=1e-4), err

    print("KERNEL_OK")
</pallas_src>

<mosaic_0001>
module attributes {stable_mosaic.version = 11 : i64} {
  func.func @mlp_kernel(%arg0: i32, %arg1: memref<256x128xf32, #tpu.memory_space<vmem>>, %arg2: memref<5x128x128xbf16, #tpu.memory_space<vmem>>, %arg3: memref<256x128xf32, #tpu.memory_space<vmem>>) attributes {dimension_semantics = [#tpu.dimension_semantics<parallel>], iteration_bounds = array<i64: 1>, scalar_prefetch = 0 : i64, scratch_operands = 0 : i64, tpu.core_type = #tpu.core_type<tc>, window_params = [{transform_indices = @transform_0, window_bounds = array<i64: 256, 128>}, {pipeline_mode = #tpu.pipeline_mode<synchronous>, transform_indices = @transform_1, window_bounds = array<i64: 5, 128, 128>}, {transform_indices = @transform_2, window_bounds = array<i64: 256, 128>}]} {
    %c0 = arith.constant 0 : index
    %c0_0 = arith.constant 0 : index
    %0 = vector.load %arg1[%c0, %c0_0] : memref<256x128xf32, #tpu.memory_space<vmem>>, vector<256x128xf32>
    %1 = arith.truncf %0 : vector<256x128xf32> to vector<256x128xbf16>
    %c0_1 = arith.constant 0 : index
    %c0_2 = arith.constant 0 : index
    %c0_3 = arith.constant 0 : index
    %2 = vector.load %arg2[%c0_1, %c0_2, %c0_3] : memref<5x128x128xbf16, #tpu.memory_space<vmem>>, vector<1x128x128xbf16>
    %3 = vector.shape_cast %2 : vector<1x128x128xbf16> to vector<128x128xbf16>
    %cst = arith.constant dense<0.000000e+00> : vector<256x128xf32>
    %4 = tpu.matmul %1, %3, %cst {dimension_numbers = #tpu.dot_dimension_numbers<[1], [0], [0], [1], [0, 0, 1, 1], [], []>} : vector<256x128xbf16>, vector<128x128xbf16>, vector<256x128xf32> -> vector<256x128xf32>
    %cst_4 = arith.constant 0.000000e+00 : f32
    %5 = vector.broadcast %cst_4 : f32 to vector<256x128xf32>
    %6 = arith.maximumf %4, %5 : vector<256x128xf32>
    %7 = arith.truncf %6 : vector<256x128xf32> to vector<256x128xbf16>
    %c1 = arith.constant 1 : index
    %c0_5 = arith.constant 0 : index
    %c0_6 = arith.constant 0 : index
    %8 = vector.load %arg2[%c1, %c0_5, %c0_6] : memref<5x128x128xbf16, #tpu.memory_space<vmem>>, vector<1x128x128xbf16>
    %9 = vector.shape_cast %8 : vector<1x128x128xbf16> to vector<128x128xbf16>
    %cst_7 = arith.constant dense<0.000000e+00> : vector<256x128xf32>
    %10 = tpu.matmul %7, %9, %cst_7 {dimension_numbers = #tpu.dot_dimension_numbers<[1], [0], [0], [1], [0, 0, 1, 1], [], []>} : vector<256x128xbf16>, vector<128x128xbf16>, vector<256x128xf32> -> vector<256x128xf32>
    %cst_8 = arith.constant 0.000000e+00 : f32
    %11 = vector.broadcast %cst_8 : f32 to vector<256x128xf32>
    %12 = arith.maximumf %10, %11 : vector<256x128xf32>
    %13 = arith.truncf %12 : vector<256x128xf32> to vector<256x128xbf16>
    %c2 = arith.constant 2 : index
    %c0_9 = arith.constant 0 : index
    %c0_10 = arith.constant 0 : index
    %14 = vector.load %arg2[%c2, %c0_9, %c0_10] : memref<5x128x128xbf16, #tpu.memory_space<vmem>>, vector<1x128x128xbf16>
    %15 = vector.shape_cast %14 : vector<1x128x128xbf16> to vector<128x128xbf16>
    %cst_11 = arith.constant dense<0.000000e+00> : vector<256x128xf32>
    %16 = tpu.matmul %13, %15, %cst_11 {dimension_numbers = #tpu.dot_dimension_numbers<[1], [0], [0], [1], [0, 0, 1, 1], [], []>} : vector<256x128xbf16>, vector<128x128xbf16>, vector<256x128xf32> -> vector<256x128xf32>
    %cst_12 = arith.constant 0.000000e+00 : f32
    %17 = vector.broadcast %cst_12 : f32 to vector<256x128xf32>
    %18 = arith.maximumf %16, %17 : vector<256x128xf32>
    %19 = arith.truncf %18 : vector<256x128xf32> to vector<256x128xbf16>
    %c3 = arith.constant 3 : index
    %c0_13 = arith.constant 0 : index
    %c0_14 = arith.constant 0 : index
    %20 = vector.load %arg2[%c3, %c0_13, %c0_14] : memref<5x128x128xbf16, #tpu.memory_space<vmem>>, vector<1x128x128xbf16>
    %21 = vector.shape_cast %20 : vector<1x128x128xbf16> to vector<128x128xbf16>
    %cst_15 = arith.constant dense<0.000000e+00> : vector<256x128xf32>
    %22 = tpu.matmul %19, %21, %cst_15 {dimension_numbers = #tpu.dot_dimension_numbers<[1], [0], [0], [1], [0, 0, 1, 1], [], []>} : vector<256x128xbf16>, vector<128x128xbf16>, vector<256x128xf32> -> vector<256x128xf32>
    %cst_16 = arith.constant 0.000000e+00 : f32
    %23 = vector.broadcast %cst_16 : f32 to vector<256x128xf32>
    %24 = arith.maximumf %22, %23 : vector<256x128xf32>
    %25 = arith.truncf %24 : vector<256x128xf32> to vector<256x128xbf16>
    %c4 = arith.constant 4 : index
    %c0_17 = arith.constant 0 : index
    %c0_18 = arith.constant 0 : index
    %26 = vector.load %arg2[%c4, %c0_17, %c0_18] : memref<5x128x128xbf16, #tpu.memory_space<vmem>>, vector<1x128x128xbf16>
    %27 = vector.shape_cast %26 : vector<1x128x128xbf16> to vector<128x128xbf16>
    %cst_19 = arith.constant dense<0.000000e+00> : vector<256x128xf32>
    %28 = tpu.matmul %25, %27, %cst_19 {dimension_numbers = #tpu.dot_dimension_numbers<[1], [0], [0], [1], [0, 0, 1, 1], [], []>} : vector<256x128xbf16>, vector<128x128xbf16>, vector<256x128xf32> -> vector<256x128xf32>
    %c0_20 = arith.constant 0 : index
    %c0_21 = arith.constant 0 : index
    %29 = vector.load %arg3[%c0_20, %c0_21] : memref<256x128xf32, #tpu.memory_space<vmem>>, vector<256x128xf32>
    tpu.vector_store %arg3[%c0_20, %c0_21], %28 {strides = array<i32>} : memref<256x128xf32, #tpu.memory_space<vmem>>, vector<256x128xf32>,
    return
  }
  func.func @transform_0(%arg0: i32) -> (i32, i32) {
    %c0_i32 = arith.constant 0 : i32
    %c0_i32_0 = arith.constant 0 : i32
    return %arg0, %c0_i32 : i32, i32
  }
  func.func @transform_1(%arg0: i32) -> (i32, i32, i32) {
    %c0_i32 = arith.constant 0 : i32
    %c0_i32_0 = arith.constant 0 : i32
    %c0_i32_1 = arith.constant 0 : i32
    %c0_i32_2 = arith.constant 0 : i32
    return %c0_i32, %c0_i32_0, %c0_i32_1 : i32, i32, i32
  }
  func.func @transform_2(%arg0: i32) -> (i32, i32) {
    %c0_i32 = arith.constant 0 : i32
    %c0_i32_0 = arith.constant 0 : i32
    return %arg0, %c0_i32 : i32, i32
  }
}

</mosaic_0001>

<llo_original>
// kernel: tpu_custom_call.1
$region0: #{tpu_custom_call.1}
  #allocation0 [shape = 'u32[]', space=smem, size = 0x4, offset = 0x4, fixed_abs, tag = 'smem constant byte address 0x4 - core index']
  #allocation1 [shape = 'u32[144,128]{1,0:T(1,128)}', space=vmem, size = 0x12000, scoped, tag = 'internal scratch']
  %s0 = inlined_call_operand.hbm [shape: f32[256,128], index: 0, kind: input, shape index: {}]
  %s1 = inlined_call_operand.hbm [shape: bf16[5,128,128], index: 1, kind: input, shape index: {}]
  %s2 = inlined_call_operand.hbm [shape: f32[256,128], index: 2, kind: output, shape index: {}]
  %s3 = sld [smem:[#allocation0]]
  $region26: #{tpu_custom_call.1} parent=0
    _
  %s5 = ssub.s32 1, %s3
  %s6 = scalar_select 0, %s5, %s3
  $region1: #{tpu_custom_call.1} parent=0
    #allocation2 [shape = 'u8[131072]{0}', space=vmem, size = 0x20000, scoped, tag = 'input window, operand 0, single buffered']
    #allocation3 [shape = 's32[1]{0}', space=sflag, size = 0x4, scoped, tag = 'scoped memory for tpu_custom_call.1']
    #allocation4 [shape = 's32[1]{0}', space=sflag, size = 0x4, scoped, tag = 'scoped memory for tpu_custom_call.1']
    #allocation5 [shape = 'u8[163840]{0}', space=vmem, size = 0x28000, scoped, tag = 'input window, operand 1, single buffered']
    #allocation6 [shape = 's32[1]{0}', space=sflag, size = 0x4, scoped, tag = 'scoped memory for tpu_custom_call.1']
    #allocation7 [shape = 'u8[131072]{0}', space=vmem, size = 0x20000, scoped, tag = 'output window, operand 0, single buffered']
    %7 = vsyncpa [#allocation3], 0
    %8 = vsyncpa [#allocation6], 0
    %9 = vsyncpa [#allocation4], 0
    // Predicated region
    $region2: #{tpu_custom_call.1} parent=1 // pred_check
      _
    $region3: #{tpu_custom_call.1} parent=1 // pred_check_branch
      %11 = sbr.rel (0) target = $region5
    $region4: #{tpu_custom_call.1} parent=1 // pred_region
      %s13 = ssub.s32 4096, 4096
      %14 = vsyncadd [#allocation3], %s13
      %s15 = sshll.u32 [#allocation2], 4
      %s16 = int_to_ptr.vmem [resolvable:$true] %s15
      %21 = dma.hbm_to_vmem [thread:$0]  %s0, 4096, %s16, [#allocation3], 128, 128, 8
    $region5: #{tpu_custom_call.1} parent=1 // pred_fallthru
      _
    // Predicated region
    $region6: #{tpu_custom_call.1} parent=1 // pred_check
      _
    $region7: #{tpu_custom_call.1} parent=1 // pred_check_branch
      %23 = sbr.rel (0) target = $region9
    $region8: #{tpu_custom_call.1} parent=1 // pred_region
      %s25 = ssub.s32 5120, 5120
      %26 = vsyncadd [#allocation6], %s25
      %s27 = sshll.u32 [#allocation5], 4
      %s28 = int_to_ptr.vmem [resolvable:$true] %s27
      %33 = dma.hbm_to_vmem [thread:$0]  %s1, 5120, %s28, [#allocation6], 64, 64, 4
    $region9: #{tpu_custom_call.1} parent=1 // pred_fallthru
      _
    // Predicated region
    $region10: #{tpu_custom_call.1} parent=1 // pred_check
      _
    $region11: #{tpu_custom_call.1} parent=1 // pred_check_branch
      %35 = sbr.rel (0) target = $region13
    $region12: #{tpu_custom_call.1} parent=1 // pred_region
      %36 = dma.done [#allocation3], 4096
    $region13: #{tpu_custom_call.1} parent=1 // pred_fallthru
      _
    // Predicated region
    $region14: #{tpu_custom_call.1} parent=1 // pred_check
      _
    $region15: #{tpu_custom_call.1} parent=1 // pred_check_branch
      %38 = sbr.rel (0) target = $region17
    $region16: #{tpu_custom_call.1} parent=1 // pred_region
      %39 = dma.done [#allocation6], 5120
    $region17: #{tpu_custom_call.1} parent=1 // pred_fallthru
      _
    %v41 = vld [vmem:[#allocation2] sm:$0xff]
    %v42 = vld [vmem:[#allocation2 + $0x8] sm:$0xff]
    %v43 = vld [vmem:[#allocation2 + $0x10] sm:$0xff]
    %v44 = vld [vmem:[#allocation2 + $0x18] sm:$0xff]
    %v45 = vld [vmem:[#allocation2 + $0x20] sm:$0xff]
    %v46 = vld [vmem:[#allocation2 + $0x28] sm:$0xff]
    %v47 = vld [vmem:[#allocation2 + $0x30] sm:$0xff]
    %v48 = vld [vmem:[#allocation2 + $0x38] sm:$0xff]
    %v49 = vld [vmem:[#allocation2 + $0x40] sm:$0xff]
    %v50 = vld [vmem:[#allocation2 + $0x48] sm:$0xff]
    %v51 = vld [vmem:[#allocation2 + $0x50] sm:$0xff]
    %v52 = vld [vmem:[#allocation2 + $0x58] sm:$0xff]
    %v53 = vld [vmem:[#allocation2 + $0x60] sm:$0xff]
    %v54 = vld [vmem:[#allocation2 + $0x68] sm:$0xff]
    %v55 = vld [vmem:[#allocation2 + $0x70] sm:$0xff]
    %v56 = vld [vmem:[#allocation2 + $0x78] sm:$0xff]
    %v57 = vld [vmem:[#allocation2 + $0x80] sm:$0xff]
    %v58 = vld [vmem:[#allocation2 + $0x88] sm:$0xff]
    %v59 = vld [vmem:[#allocation2 + $0x90] sm:$0xff]
    %v60 = vld [vmem:[#allocation2 + $0x98] sm:$0xff]
    %v61 = vld [vmem:[#allocation2 + $0xa0] sm:$0xff]
    %v62 = vld [vmem:[#allocation2 + $0xa8] sm:$0xff]
    %v63 = vld [vmem:[#allocation2 + $0xb0] sm:$0xff]
    %v64 = vld [vmem:[#allocation2 + $0xb8] sm:$0xff]
    %v65 = vld [vmem:[#allocation2 + $0xc0] sm:$0xff]
    %v66 = vld [vmem:[#allocation2 + $0xc8] sm:$0xff]
    %v67 = vld [vmem:[#allocation2 + $0xd0] sm:$0xff]
    %v68 = vld [vmem:[#allocation2 + $0xd8] sm:$0xff]
    %v69 = vld [vmem:[#allocation2 + $0xe0] sm:$0xff]
    %v70 = vld [vmem:[#allocation2 + $0xe8] sm:$0xff]
    %v71 = vld [vmem:[#allocation2 + $0xf0] sm:$0xff]
    %v72 = vld [vmem:[#allocation2 + $0xf8] sm:$0xff]
    %v73 = vpack.c.bf16 %v42, %v41
    %v74 = vpack.c.bf16 %v44, %v43
    %v75 = vpack.c.bf16 %v46, %v45
    %v76 = vpack.c.bf16 %v48, %v47
    %v77 = vpack.c.bf16 %v50, %v49
    %v78 = vpack.c.bf16 %v52, %v51
    %v79 = vpack.c.bf16 %v54, %v53
    %v80 = vpack.c.bf16 %v56, %v55
    %v81 = vpack.c.bf16 %v58, %v57
    %v82 = vpack.c.bf16 %v60, %v59
    %v83 = vpack.c.bf16 %v62, %v61
    %v84 = vpack.c.bf16 %v64, %v63
    %v85 = vpack.c.bf16 %v66, %v65
    %v86 = vpack.c.bf16 %v68, %v67
    %v87 = vpack.c.bf16 %v70, %v69
    %v88 = vpack.c.bf16 %v72, %v71
    %v89 = vld [vmem:[#allocation5] sm:$0xf]
    %v90 = vld [vmem:[#allocation5 + $0x4] sm:$0xf]
    %v91 = vld [vmem:[#allocation5 + $0x8] sm:$0xf]
    %v92 = vld [vmem:[#allocation5 + $0xc] sm:$0xf]
    %v93 = vld [vmem:[#allocation5 + $0x10] sm:$0xf]
    %v94 = vld [vmem:[#allocation5 + $0x14] sm:$0xf]
    %v95 = vld [vmem:[#allocation5 + $0x18] sm:$0xf]
    %v96 = vld [vmem:[#allocation5 + $0x1c] sm:$0xf]
    %v97 = vld [vmem:[#allocation5 + $0x20] sm:$0xf]
    %v98 = vld [vmem:[#allocation5 + $0x24] sm:$0xf]
    %v99 = vld [vmem:[#allocation5 + $0x28] sm:$0xf]
    %v100 = vld [vmem:[#allocation5 + $0x2c] sm:$0xf]
    %v101 = vld [vmem:[#allocation5 + $0x30] sm:$0xf]
    %v102 = vld [vmem:[#allocation5 + $0x34] sm:$0xf]
    %v103 = vld [vmem:[#allocation5 + $0x38] sm:$0xf]
    %v104 = vld [vmem:[#allocation5 + $0x3c] sm:$0xf]
    %v121 = vunpack.c.l.b16 %v89
    %v122 = vunpack.c.l.b16 %v90
    %v123 = vunpack.c.l.b16 %v91
    %v124 = vunpack.c.l.b16 %v92
    %v125 = vunpack.c.l.b16 %v93
    %v126 = vunpack.c.l.b16 %v94
    %v127 = vunpack.c.l.b16 %v95
    %v128 = vunpack.c.l.b16 %v96
    %v129 = vunpack.c.l.b16 %v97
    %v130 = vunpack.c.l.b16 %v98
    %v131 = vunpack.c.l.b16 %v99
    %v132 = vunpack.c.l.b16 %v100
    %v133 = vunpack.c.l.b16 %v101
    %v134 = vunpack.c.l.b16 %v102
    %v135 = vunpack.c.l.b16 %v103
    %v136 = vunpack.c.l.b16 %v104
    %v137 = vpack.c.b16 %v122, %v121
    %v138 = vpack.c.b16 %v124, %v123
    %v139 = vpack.c.b16 %v126, %v125
    %v140 = vpack.c.b16 %v128, %v127
    %v141 = vpack.c.b16 %v130, %v129
    %v142 = vpack.c.b16 %v132, %v131
    %v143 = vpack.c.b16 %v134, %v133
    %v144 = vpack.c.b16 %v136, %v135
    %153 = vmatprep.subr.bf16.mxu0 0
    %154 = vmatpush1.bf16.msra.mxu0 %v144
    %155 = vmatprep.subr.bf16.mxu0 0
    %156 = vmatpush1.bf16.msra.mxu0 %v143
    %157 = vmatprep.subr.bf16.mxu0 0
    %158 = vmatpush1.bf16.msra.mxu0 %v142
    %159 = vmatprep.subr.bf16.mxu0 0
    %160 = vmatpush1.bf16.msra.mxu0 %v141
    %161 = vmatprep.subr.bf16.mxu0 0
    %162 = vmatpush1.bf16.msra.mxu0 %v140
    %163 = vmatprep.subr.bf16.mxu0 0
    %164 = vmatpush1.bf16.msra.mxu0 %v139
    %165 = vmatprep.subr.bf16.mxu0 0
    %166 = vmatpush1.bf16.msra.mxu0 %v138
    %167 = vmatprep.subr.bf16.mxu0 0
    %168 = vmatpush1.bf16.msra.mxu0 %v137
    %169 = vmatprep.subr.bf16.mxu0 0
    %170 = vmatpush2.bf16.msra.mxu0 0
    %171 = vmatprep.subr.bf16.mxu0 0
    %172 = vmatpush2.bf16.msra.mxu0 0
    %173 = vmatprep.subr.bf16.mxu0 0
    %174 = vmatpush2.bf16.msra.mxu0 0
    %175 = vmatprep.subr.bf16.mxu0 0
    %176 = vmatpush2.bf16.msra.mxu0 0
    %177 = vmatprep.subr.bf16.mxu0 0
    %178 = vmatpush2.bf16.msra.mxu0 0
    %179 = vmatprep.subr.bf16.mxu0 0
    %180 = vmatpush2.bf16.msra.mxu0 0
    %181 = vmatprep.subr.bf16.mxu0 0
    %182 = vmatpush2.bf16.msra.mxu0 0
    %183 = vmatprep.subr.bf16.mxu0 0
    %184 = vmatpush2.bf16.msra.mxu0 0
    %185 = vmatprep.mubr.bf16.mxu0 0
    %186 = vmatmul.mubr.bf16.gmra.mxu0 %v73
    %v187 = vpop.f32.mrf.mxu0
    %v188 = vadd.f32 0.0, %v187
    %v189 = vpop.f32.mrf.mxu0
    %v190 = vpop.f32.mrf.mxu0
    %v191 = vadd.f32 0.0, %v190
    %v192 = vpop.f32.mrf.mxu0
    %193 = vmatprep.mubr.bf16.mxu0 0
    %194 = vmatmul.mubr.bf16.gmra.mxu0 %v74
    %v195 = vpop.f32.mrf.mxu0
    %v196 = vadd.f32 0.0, %v195
    %v197 = vpop.f32.mrf.mxu0
    %v198 = vpop.f32.mrf.mxu0
    %v199 = vadd.f32 0.0, %v198
    %v200 = vpop.f32.mrf.mxu0
    %201 = vmatprep.mubr.bf16.mxu0 0
    %202 = vmatmul.mubr.bf16.gmra.mxu0 %v75
    %v203 = vpop.f32.mrf.mxu0
    %v204 = vadd.f32 0.0, %v203
    %v205 = vpop.f32.mrf.mxu0
    %v206 = vpop.f32.mrf.mxu0
    %v207 = vadd.f32 0.0, %v206
    %v208 = vpop.f32.mrf.mxu0
    %209 = vmatprep.mubr.bf16.mxu0 0
    %210 = vmatmul.mubr.bf16.gmra.mxu0 %v76
    %v211 = vpop.f32.mrf.mxu0
    %v212 = vadd.f32 0.0, %v211
    %v213 = vpop.f32.mrf.mxu0
    %v214 = vpop.f32.mrf.mxu0
    %v215 = vadd.f32 0.0, %v214
    %v216 = vpop.f32.mrf.mxu0
    %217 = vmatprep.mubr.bf16.mxu0 0
    %218 = vmatmul.mubr.bf16.gmra.mxu0 %v77
    %v219 = vpop.f32.mrf.mxu0
    %v220 = vadd.f32 0.0, %v219
    %v221 = vpop.f32.mrf.mxu0
    %v222 = vpop.f32.mrf.mxu0
    %v223 = vadd.f32 0.0, %v222
    %v224 = vpop.f32.mrf.mxu0
    %225 = vmatprep.mubr.bf16.mxu0 0
    %226 = vmatmul.mubr.bf16.gmra.mxu0 %v78
    %v227 = vpop.f32.mrf.mxu0
    %v228 = vadd.f32 0.0, %v227
    %v229 = vpop.f32.mrf.mxu0
    %v230 = vpop.f32.mrf.mxu0
    %v231 = vadd.f32 0.0, %v230
    %v232 = vpop.f32.mrf.mxu0
    %233 = vmatprep.mubr.bf16.mxu0 0
    %234 = vmatmul.mubr.bf16.gmra.mxu0 %v79
    %v235 = vpop.f32.mrf.mxu0
    %v236 = vadd.f32 0.0, %v235
    %v237 = vpop.f32.mrf.mxu0
    %v238 = vpop.f32.mrf.mxu0
    %v239 = vadd.f32 0.0, %v238
    %v240 = vpop.f32.mrf.mxu0
    %241 = vmatprep.mubr.bf16.mxu0 0
    %242 = vmatmul.mubr.bf16.gmra.mxu0 %v80
    %v243 = vpop.f32.mrf.mxu0
    %v244 = vadd.f32 0.0, %v243
    %v245 = vpop.f32.mrf.mxu0
    %v246 = vpop.f32.mrf.mxu0
    %v247 = vadd.f32 0.0, %v246
    %v248 = vpop.f32.mrf.mxu0
    %249 = vmatprep.mubr.bf16.mxu0 0
    %250 = vmatmul.mubr.bf16.gmra.mxu0 %v81
    %v251 = vpop.f32.mrf.mxu0
    %v252 = vadd.f32 0.0, %v251
    %v253 = vpop.f32.mrf.mxu0
    %v254 = vpop.f32.mrf.mxu0
    %v255 = vadd.f32 0.0, %v254
    %v256 = vpop.f32.mrf.mxu0
    %257 = vmatprep.mubr.bf16.mxu0 0
    %258 = vmatmul.mubr.bf16.gmra.mxu0 %v82
    %v259 = vpop.f32.mrf.mxu0
    %v260 = vadd.f32 0.0, %v259
    %v261 = vpop.f32.mrf.mxu0
    %v262 = vpop.f32.mrf.mxu0
    %v263 = vadd.f32 0.0, %v262
    %v264 = vpop.f32.mrf.mxu0
    %265 = vmatprep.mubr.bf16.mxu0 0
    %266 = vmatmul.mubr.bf16.gmra.mxu0 %v83
    %v267 = vpop.f32.mrf.mxu0
    %v268 = vadd.f32 0.0, %v267
    %v269 = vpop.f32.mrf.mxu0
    %v270 = vpop.f32.mrf.mxu0
    %v271 = vadd.f32 0.0, %v270
    %v272 = vpop.f32.mrf.mxu0
    %273 = vmatprep.mubr.bf16.mxu0 0
    %274 = vmatmul.mubr.bf16.gmra.mxu0 %v84
    %v275 = vpop.f32.mrf.mxu0
    %v276 = vadd.f32 0.0, %v275
    %v277 = vpop.f32.mrf.mxu0
    %v278 = vpop.f32.mrf.mxu0
    %v279 = vadd.f32 0.0, %v278
    %v280 = vpop.f32.mrf.mxu0
    %281 = vmatprep.mubr.bf16.mxu0 0
    %282 = vmatmul.mubr.bf16.gmra.mxu0 %v85
    %v283 = vpop.f32.mrf.mxu0
    %v284 = vadd.f32 0.0, %v283
    %v285 = vpop.f32.mrf.mxu0
    %v286 = vpop.f32.mrf.mxu0
    %v287 = vadd.f32 0.0, %v286
    %v288 = vpop.f32.mrf.mxu0
    %289 = vmatprep.mubr.bf16.mxu0 0
    %290 = vmatmul.mubr.bf16.gmra.mxu0 %v86
    %v291 = vpop.f32.mrf.mxu0
    %v292 = vadd.f32 0.0, %v291
    %v293 = vpop.f32.mrf.mxu0
    %v294 = vpop.f32.mrf.mxu0
    %v295 = vadd.f32 0.0, %v294
    %v296 = vpop.f32.mrf.mxu0
    %297 = vmatprep.mubr.bf16.mxu0 0
    %298 = vmatmul.mubr.bf16.gmra.mxu0 %v87
    %v299 = vpop.f32.mrf.mxu0
    %v300 = vadd.f32 0.0, %v299
    %v301 = vpop.f32.mrf.mxu0
    %v302 = vpop.f32.mrf.mxu0
    %v303 = vadd.f32 0.0, %v302
    %v304 = vpop.f32.mrf.mxu0
    %305 = vmatprep.mubr.bf16.mxu0 0
    %306 = vmatmul.mubr.bf16.gmra.mxu0 %v88
    %v307 = vpop.f32.mrf.mxu0
    %v308 = vadd.f32 0.0, %v307
    %v309 = vpop.f32.mrf.mxu0
    %v310 = vpop.f32.mrf.mxu0
    %v311 = vadd.f32 0.0, %v310
    %v312 = vpop.f32.mrf.mxu0
    %313 = vdwg.mxu0
    %v314 = vmax.f32 %v188, 0.0
    %v315 = vmax.f32 %v191, 0.0
    %v316 = vmax.f32 %v196, 0.0
    %v317 = vmax.f32 %v199, 0.0
    %v318 = vmax.f32 %v204, 0.0
    %v319 = vmax.f32 %v207, 0.0
    %v320 = vmax.f32 %v212, 0.0
    %v321 = vmax.f32 %v215, 0.0
    %v322 = vmax.f32 %v220, 0.0
    %v323 = vmax.f32 %v223, 0.0
    %v324 = vmax.f32 %v228, 0.0
    %v325 = vmax.f32 %v231, 0.0
    %v326 = vmax.f32 %v236, 0.0
    %v327 = vmax.f32 %v239, 0.0
    %v328 = vmax.f32 %v244, 0.0
    %v329 = vmax.f32 %v247, 0.0
    %v330 = vmax.f32 %v252, 0.0
    %v331 = vmax.f32 %v255, 0.0
    %v332 = vmax.f32 %v260, 0.0
    %v333 = vmax.f32 %v263, 0.0
    %v334 = vmax.f32 %v268, 0.0
    %v335 = vmax.f32 %v271, 0.0
    %v336 = vmax.f32 %v276, 0.0
    %v337 = vmax.f32 %v279, 0.0
    %v338 = vmax.f32 %v284, 0.0
    %v339 = vmax.f32 %v287, 0.0
    %v340 = vmax.f32 %v292, 0.0
    %v341 = vmax.f32 %v295, 0.0
    %v342 = vmax.f32 %v300, 0.0
    %v343 = vmax.f32 %v303, 0.0
    %v344 = vmax.f32 %v308, 0.0
    %v345 = vmax.f32 %v311, 0.0
    %v346 = vpack.c.bf16 %v315, %v314
    %v347 = vpack.c.bf16 %v317, %v316
    %v348 = vpack.c.bf16 %v319, %v318
    %v349 = vpack.c.bf16 %v321, %v320
    %v350 = vpack.c.bf16 %v323, %v322
    %v351 = vpack.c.bf16 %v325, %v324
    %v352 = vpack.c.bf16 %v327, %v326
    %v353 = vpack.c.bf16 %v329, %v328
    %v354 = vpack.c.bf16 %v331, %v330
    %v355 = vpack.c.bf16 %v333, %v332
    %v356 = vpack.c.bf16 %v335, %v334
    %v357 = vpack.c.bf16 %v337, %v336
    %v358 = vpack.c.bf16 %v339, %v338
    %v359 = vpack.c.bf16 %v341, %v340
    %v360 = vpack.c.bf16 %v343, %v342
    %v361 = vpack.c.bf16 %v345, %v344
    %s362 = scalar_lea.vmem [#allocation5], 64
    %v363 = vld [vmem:[%s362] sm:$0xf]
    %v364 = vld [vmem:[%s362 + $0x4] sm:$0xf]
    %v365 = vld [vmem:[%s362 + $0x8] sm:$0xf]
    %v366 = vld [vmem:[%s362 + $0xc] sm:$0xf]
    %v367 = vld [vmem:[%s362 + $0x10] sm:$0xf]
    %v368 = vld [vmem:[%s362 + $0x14] sm:$0xf]
    %v369 = vld [vmem:[%s362 + $0x18] sm:$0xf]
    %v370 = vld [vmem:[%s362 + $0x1c] sm:$0xf]
    %v371 = vld [vmem:[%s362 + $0x20] sm:$0xf]
    %v372 = vld [vmem:[%s362 + $0x24] sm:$0xf]
    %v373 = vld [vmem:[%s362 + $0x28] sm:$0xf]
    %v374 = vld [vmem:[%s362 + $0x2c] sm:$0xf]
    %v375 = vld [vmem:[%s362 + $0x30] sm:$0xf]
    %v376 = vld [vmem:[%s362 + $0x34] sm:$0xf]
    %v377 = vld [vmem:[%s362 + $0x38] sm:$0xf]
    %v378 = vld [vmem:[%s362 + $0x3c] sm:$0xf]
    %v395 = vunpack.c.l.b16 %v363
    %v396 = vunpack.c.l.b16 %v364
    %v397 = vunpack.c.l.b16 %v365
    %v398 = vunpack.c.l.b16 %v366
    %v399 = vunpack.c.l.b16 %v367
    %v400 = vunpack.c.l.b16 %v368
    %v401 = vunpack.c.l.b16 %v369
    %v402 = vunpack.c.l.b16 %v370
    %v403 = vunpack.c.l.b16 %v371
    %v404 = vunpack.c.l.b16 %v372
    %v405 = vunpack.c.l.b16 %v373
    %v406 = vunpack.c.l.b16 %v374
    %v407 = vunpack.c.l.b16 %v375
    %v408 = vunpack.c.l.b16 %v376
    %v409 = vunpack.c.l.b16 %v377
    %v410 = vunpack.c.l.b16 %v378
    %v411 = vpack.c.b16 %v396, %v395
    %v412 = vpack.c.b16 %v398, %v397
    %v413 = vpack.c.b16 %v400, %v399
    %v414 = vpack.c.b16 %v402, %v401
    %v415 = vpack.c.b16 %v404, %v403
    %v416 = vpack.c.b16 %v406, %v405
    %v417 = vpack.c.b16 %v408, %v407
    %v418 = vpack.c.b16 %v410, %v409
    %427 = vmatprep.subr.bf16.mxu0 0
    %428 = vmatpush1.bf16.msra.mxu0 %v418
    %429 = vmatprep.subr.bf16.mxu0 0
    %430 = vmatpush1.bf16.msra.mxu0 %v417
    %431 = vmatprep.subr.bf16.mxu0 0
    %432 = vmatpush1.bf16.msra.mxu0 %v416
    %433 = vmatprep.subr.bf16.mxu0 0
    %434 = vmatpush1.bf16.msra.mxu0 %v415
    %435 = vmatprep.subr.bf16.mxu0 0
    %436 = vmatpush1.bf16.msra.mxu0 %v414
    %437 = vmatprep.subr.bf16.mxu0 0
    %438 = vmatpush1.bf16.msra.mxu0 %v413
    %439 = vmatprep.subr.bf16.mxu0 0
    %440 = vmatpush1.bf16.msra.mxu0 %v412
    %441 = vmatprep.subr.bf16.mxu0 0
    %442 = vmatpush1.bf16.msra.mxu0 %v411
    %443 = vmatprep.subr.bf16.mxu0 0
    %444 = vmatpush2.bf16.msra.mxu0 0
    %445 = vmatprep.subr.bf16.mxu0 0
    %446 = vmatpush2.bf16.msra.mxu0 0
    %447 = vmatprep.subr.bf16.mxu0 0
    %448 = vmatpush2.bf16.msra.mxu0 0
    %449 = vmatprep.subr.bf16.mxu0 0
    %450 = vmatpush2.bf16.msra.mxu0 0
    %451 = vmatprep.subr.bf16.mxu0 0
    %452 = vmatpush2.bf16.msra.mxu0 0
    %453 = vmatprep.subr.bf16.mxu0 0
    %454 = vmatpush2.bf16.msra.mxu0 0
    %455 = vmatprep.subr.bf16.mxu0 0
    %456 = vmatpush2.bf16.msra.mxu0 0
    %457 = vmatprep.subr.bf16.mxu0 0
    %458 = vmatpush2.bf16.msra.mxu0 0
    %459 = vmatprep.mubr.bf16.mxu0 0
    %460 = vmatmul.mubr.bf16.gmra.mxu0 %v346
    %v461 = vpop.f32.mrf.mxu0
    %v462 = vadd.f32 0.0, %v461
    %v463 = vpop.f32.mrf.mxu0
    %v464 = vpop.f32.mrf.mxu0
    %v465 = vadd.f32 0.0, %v464
    %v466 = vpop.f32.mrf.mxu0
    %467 = vmatprep.mubr.bf16.mxu0 0
    %468 = vmatmul.mubr.bf16.gmra.mxu0 %v347
    %v469 = vpop.f32.mrf.mxu0
    %v470 = vadd.f32 0.0, %v469
    %v471 = vpop.f32.mrf.mxu0
    %v472 = vpop.f32.mrf.mxu0
    %v473 = vadd.f32 0.0, %v472
    %v474 = vpop.f32.mrf.mxu0
    %475 = vmatprep.mubr.bf16.mxu0 0
    %476 = vmatmul.mubr.bf16.gmra.mxu0 %v348
    %v477 = vpop.f32.mrf.mxu0
    %v478 = vadd.f32 0.0, %v477
    %v479 = vpop.f32.mrf.mxu0
    %v480 = vpop.f32.mrf.mxu0
    %v481 = vadd.f32 0.0, %v480
    %v482 = vpop.f32.mrf.mxu0
    %483 = vmatprep.mubr.bf16.mxu0 0
    %484 = vmatmul.mubr.bf16.gmra.mxu0 %v349
    %v485 = vpop.f32.mrf.mxu0
    %v486 = vadd.f32 0.0, %v485
    %v487 = vpop.f32.mrf.mxu0
    %v488 = vpop.f32.mrf.mxu0
    %v489 = vadd.f32 0.0, %v488
    %v490 = vpop.f32.mrf.mxu0
    %491 = vmatprep.mubr.bf16.mxu0 0
    %492 = vmatmul.mubr.bf16.gmra.mxu0 %v350
    %v493 = vpop.f32.mrf.mxu0
    %v494 = vadd.f32 0.0, %v493
    %v495 = vpop.f32.mrf.mxu0
    %v496 = vpop.f32.mrf.mxu0
    %v497 = vadd.f32 0.0, %v496
    %v498 = vpop.f32.mrf.mxu0
    %499 = vmatprep.mubr.bf16.mxu0 0
    %500 = vmatmul.mubr.bf16.gmra.mxu0 %v351
    %v501 = vpop.f32.mrf.mxu0
    %v502 = vadd.f32 0.0, %v501
    %v503 = vpop.f32.mrf.mxu0
    %v504 = vpop.f32.mrf.mxu0
    %v505 = vadd.f32 0.0, %v504
    %v506 = vpop.f32.mrf.mxu0
    %507 = vmatprep.mubr.bf16.mxu0 0
    %508 = vmatmul.mubr.bf16.gmra.mxu0 %v352
    %v509 = vpop.f32.mrf.mxu0
    %v510 = vadd.f32 0.0, %v509
    %v511 = vpop.f32.mrf.mxu0
    %v512 = vpop.f32.mrf.mxu0
    %v513 = vadd.f32 0.0, %v512
    %v514 = vpop.f32.mrf.mxu0
    %515 = vmatprep.mubr.bf16.mxu0 0
    %516 = vmatmul.mubr.bf16.gmra.mxu0 %v353
    %v517 = vpop.f32.mrf.mxu0
    %v518 = vadd.f32 0.0, %v517
    %v519 = vpop.f32.mrf.mxu0
    %v520 = vpop.f32.mrf.mxu0
    %v521 = vadd.f32 0.0, %v520
    %v522 = vpop.f32.mrf.mxu0
    %523 = vmatprep.mubr.bf16.mxu0 0
    %524 = vmatmul.mubr.bf16.gmra.mxu0 %v354
    %v525 = vpop.f32.mrf.mxu0
    %v526 = vadd.f32 0.0, %v525
    %v527 = vpop.f32.mrf.mxu0
    %v528 = vpop.f32.mrf.mxu0
    %v529 = vadd.f32 0.0, %v528
    %v530 = vpop.f32.mrf.mxu0
    %531 = vmatprep.mubr.bf16.mxu0 0
    %532 = vmatmul.mubr.bf16.gmra.mxu0 %v355
    %v533 = vpop.f32.mrf.mxu0
    %v534 = vadd.f32 0.0, %v533
    %v535 = vpop.f32.mrf.mxu0
    %v536 = vpop.f32.mrf.mxu0
    %v537 = vadd.f32 0.0, %v536
    %v538 = vpop.f32.mrf.mxu0
    %539 = vmatprep.mubr.bf16.mxu0 0
    %540 = vmatmul.mubr.bf16.gmra.mxu0 %v356
    %v541 = vpop.f32.mrf.mxu0
    %v542 = vadd.f32 0.0, %v541
    %v543 = vpop.f32.mrf.mxu0
    %v544 = vpop.f32.mrf.mxu0
    %v545 = vadd.f32 0.0, %v544
    %v546 = vpop.f32.mrf.mxu0
    %547 = vmatprep.mubr.bf16.mxu0 0
    %548 = vmatmul.mubr.bf16.gmra.mxu0 %v357
    %v549 = vpop.f32.mrf.mxu0
    %v550 = vadd.f32 0.0, %v549
    %v551 = vpop.f32.mrf.mxu0
    %v552 = vpop.f32.mrf.mxu0
    %v553 = vadd.f32 0.0, %v552
    %v554 = vpop.f32.mrf.mxu0
    %555 = vmatprep.mubr.bf16.mxu0 0
    %556 = vmatmul.mubr.bf16.gmra.mxu0 %v358
    %v557 = vpop.f32.mrf.mxu0
    %v558 = vadd.f32 0.0, %v557
    %v559 = vpop.f32.mrf.mxu0
    %v560 = vpop.f32.mrf.mxu0
    %v561 = vadd.f32 0.0, %v560
    %v562 = vpop.f32.mrf.mxu0
    %563 = vmatprep.mubr.bf16.mxu0 0
    %564 = vmatmul.mubr.bf16.gmra.mxu0 %v359
    %v565 = vpop.f32.mrf.mxu0
    %v566 = vadd.f32 0.0, %v565
    %v567 = vpop.f32.mrf.mxu0
    %v568 = vpop.f32.mrf.mxu0
    %v569 = vadd.f32 0.0, %v568
    %v570 = vpop.f32.mrf.mxu0
    %571 = vmatprep.mubr.bf16.mxu0 0
    %572 = vmatmul.mubr.bf16.gmra.mxu0 %v360
    %v573 = vpop.f32.mrf.mxu0
    %v574 = vadd.f32 0.0, %v573
    %v575 = vpop.f32.mrf.mxu0
    %v576 = vpop.f32.mrf.mxu0
    %v577 = vadd.f32 0.0, %v576
    %v578 = vpop.f32.mrf.mxu0
    %579 = vmatprep.mubr.bf16.mxu0 0
    %580 = vmatmul.mubr.bf16.gmra.mxu0 %v361
    %v581 = vpop.f32.mrf.mxu0
    %v582 = vadd.f32 0.0, %v581
    %v583 = vpop.f32.mrf.mxu0
    %v584 = vpop.f32.mrf.mxu0
    %v585 = vadd.f32 0.0, %v584
    %v586 = vpop.f32.mrf.mxu0
    %587 = vdwg.mxu0
    %v588 = vmax.f32 %v462, 0.0
    %v589 = vmax.f32 %v465, 0.0
    %v590 = vmax.f32 %v470, 0.0
    %v591 = vmax.f32 %v473, 0.0
    %v592 = vmax.f32 %v478, 0.0
    %v593 = vmax.f32 %v481, 0.0
    %v594 = vmax.f32 %v486, 0.0
    %v595 = vmax.f32 %v489, 0.0
    %v596 = vmax.f32 %v494, 0.0
    %v597 = vmax.f32 %v497, 0.0
    %v598 = vmax.f32 %v502, 0.0
    %v599 = vmax.f32 %v505, 0.0
    %v600 = vmax.f32 %v510, 0.0
    %v601 = vmax.f32 %v513, 0.0
    %v602 = vmax.f32 %v518, 0.0
    %v603 = vmax.f32 %v521, 0.0
    %v604 = vmax.f32 %v526, 0.0
    %v605 = vmax.f32 %v529, 0.0
    %v606 = vmax.f32 %v534, 0.0
    %v607 = vmax.f32 %v537, 0.0
    %v608 = vmax.f32 %v542, 0.0
    %v609 = vmax.f32 %v545, 0.0
    %v610 = vmax.f32 %v550, 0.0
    %v611 = vmax.f32 %v553, 0.0
    %v612 = vmax.f32 %v558, 0.0
    %v613 = vmax.f32 %v561, 0.0
    %v614 = vmax.f32 %v566, 0.0
    %v615 = vmax.f32 %v569, 0.0
    %v616 = vmax.f32 %v574, 0.0
    %v617 = vmax.f32 %v577, 0.0
    %v618 = vmax.f32 %v582, 0.0
    %v619 = vmax.f32 %v585, 0.0
    %v620 = vpack.c.bf16 %v589, %v588
    %v621 = vpack.c.bf16 %v591, %v590
    %v622 = vpack.c.bf16 %v593, %v592
    %v623 = vpack.c.bf16 %v595, %v594
    %v624 = vpack.c.bf16 %v597, %v596
    %v625 = vpack.c.bf16 %v599, %v598
    %v626 = vpack.c.bf16 %v601, %v600
    %v627 = vpack.c.bf16 %v603, %v602
    %v628 = vpack.c.bf16 %v605, %v604
    %v629 = vpack.c.bf16 %v607, %v606
    %v630 = vpack.c.bf16 %v609, %v608
    %v631 = vpack.c.bf16 %v611, %v610
    %v632 = vpack.c.bf16 %v613, %v612
    %v633 = vpack.c.bf16 %v615, %v614
    %v634 = vpack.c.bf16 %v617, %v616
    %v635 = vpack.c.bf16 %v619, %v618
    %s636 = scalar_lea.vmem [#allocation5], 128
    %v637 = vld [vmem:[%s636] sm:$0xf]
    %v638 = vld [vmem:[%s636 + $0x4] sm:$0xf]
    %v639 = vld [vmem:[%s636 + $0x8] sm:$0xf]
    %v640 = vld [vmem:[%s636 + $0xc] sm:$0xf]
    %v641 = vld [vmem:[%s636 + $0x10] sm:$0xf]
    %v642 = vld [vmem:[%s636 + $0x14] sm:$0xf]
    %v643 = vld [vmem:[%s636 + $0x18] sm:$0xf]
    %v644 = vld [vmem:[%s636 + $0x1c] sm:$0xf]
    %v645 = vld [vmem:[%s636 + $0x20] sm:$0xf]
    %v646 = vld [vmem:[%s636 + $0x24] sm:$0xf]
    %v647 = vld [vmem:[%s636 + $0x28] sm:$0xf]
    %v648 = vld [vmem:[%s636 + $0x2c] sm:$0xf]
    %v649 = vld [vmem:[%s636 + $0x30] sm:$0xf]
    %v650 = vld [vmem:[%s636 + $0x34] sm:$0xf]
    %v651 = vld [vmem:[%s636 + $0x38] sm:$0xf]
    %v652 = vld [vmem:[%s636 + $0x3c] sm:$0xf]
    %v669 = vunpack.c.l.b16 %v637
    %v670 = vunpack.c.l.b16 %v638
    %v671 = vunpack.c.l.b16 %v639
    %v672 = vunpack.c.l.b16 %v640
    %v673 = vunpack.c.l.b16 %v641
    %v674 = vunpack.c.l.b16 %v642
    %v675 = vunpack.c.l.b16 %v643
    %v676 = vunpack.c.l.b16 %v644
    %v677 = vunpack.c.l.b16 %v645
    %v678 = vunpack.c.l.b16 %v646
    %v679 = vunpack.c.l.b16 %v647
    %v680 = vunpack.c.l.b16 %v648
    %v681 = vunpack.c.l.b16 %v649
    %v682 = vunpack.c.l.b16 %v650
    %v683 = vunpack.c.l.b16 %v651
    %v684 = vunpack.c.l.b16 %v652
    %v685 = vpack.c.b16 %v670, %v669
    %v686 = vpack.c.b16 %v672, %v671
    %v687 = vpack.c.b16 %v674, %v673
    %v688 = vpack.c.b16 %v676, %v675
    %v689 = vpack.c.b16 %v678, %v677
    %v690 = vpack.c.b16 %v680, %v679
    %v691 = vpack.c.b16 %v682, %v681
    %v692 = vpack.c.b16 %v684, %v683
    %701 = vmatprep.subr.bf16.mxu0 0
    %702 = vmatpush1.bf16.msra.mxu0 %v692
    %703 = vmatprep.subr.bf16.mxu0 0
    %704 = vmatpush1.bf16.msra.mxu0 %v691
    %705 = vmatprep.subr.bf16.mxu0 0
    %706 = vmatpush1.bf16.msra.mxu0 %v690
    %707 = vmatprep.subr.bf16.mxu0 0
    %708 = vmatpush1.bf16.msra.mxu0 %v689
    %709 = vmatprep.subr.bf16.mxu0 0
    %710 = vmatpush1.bf16.msra.mxu0 %v688
    %711 = vmatprep.subr.bf16.mxu0 0
    %712 = vmatpush1.bf16.msra.mxu0 %v687
    %713 = vmatprep.subr.bf16.mxu0 0
    %714 = vmatpush1.bf16.msra.mxu0 %v686
    %715 = vmatprep.subr.bf16.mxu0 0
    %716 = vmatpush1.bf16.msra.mxu0 %v685
    %717 = vmatprep.subr.bf16.mxu0 0
    %718 = vmatpush2.bf16.msra.mxu0 0
    %719 = vmatprep.subr.bf16.mxu0 0
    %720 = vmatpush2.bf16.msra.mxu0 0
    %721 = vmatprep.subr.bf16.mxu0 0
    %722 = vmatpush2.bf16.msra.mxu0 0
    %723 = vmatprep.subr.bf16.mxu0 0
    %724 = vmatpush2.bf16.msra.mxu0 0
    %725 = vmatprep.subr.bf16.mxu0 0
    %726 = vmatpush2.bf16.msra.mxu0 0
    %727 = vmatprep.subr.bf16.mxu0 0
    %728 = vmatpush2.bf16.msra.mxu0 0
    %729 = vmatprep.subr.bf16.mxu0 0
    %730 = vmatpush2.bf16.msra.mxu0 0
    %731 = vmatprep.subr.bf16.mxu0 0
    %732 = vmatpush2.bf16.msra.mxu0 0
    %733 = vmatprep.mubr.bf16.mxu0 0
    %734 = vmatmul.mubr.bf16.gmra.mxu0 %v620
    %v735 = vpop.f32.mrf.mxu0
    %v736 = vadd.f32 0.0, %v735
    %v737 = vpop.f32.mrf.mxu0
    %v738 = vpop.f32.mrf.mxu0
    %v739 = vadd.f32 0.0, %v738
    %v740 = vpop.f32.mrf.mxu0
    %741 = vmatprep.mubr.bf16.mxu0 0
    %742 = vmatmul.mubr.bf16.gmra.mxu0 %v621
    %v743 = vpop.f32.mrf.mxu0
    %v744 = vadd.f32 0.0, %v743
    %v745 = vpop.f32.mrf.mxu0
    %v746 = vpop.f32.mrf.mxu0
    %v747 = vadd.f32 0.0, %v746
    %v748 = vpop.f32.mrf.mxu0
    %749 = vmatprep.mubr.bf16.mxu0 0
    %750 = vmatmul.mubr.bf16.gmra.mxu0 %v622
    %v751 = vpop.f32.mrf.mxu0
    %v752 = vadd.f32 0.0, %v751
    %v753 = vpop.f32.mrf.mxu0
    %v754 = vpop.f32.mrf.mxu0
    %v755 = vadd.f32 0.0, %v754
    %v756 = vpop.f32.mrf.mxu0
    %757 = vmatprep.mubr.bf16.mxu0 0
    %758 = vmatmul.mubr.bf16.gmra.mxu0 %v623
    %v759 = vpop.f32.mrf.mxu0
    %v760 = vadd.f32 0.0, %v759
    %v761 = vpop.f32.mrf.mxu0
    %v762 = vpop.f32.mrf.mxu0
    %v763 = vadd.f32 0.0, %v762
    %v764 = vpop.f32.mrf.mxu0
    %765 = vmatprep.mubr.bf16.mxu0 0
    %766 = vmatmul.mubr.bf16.gmra.mxu0 %v624
    %v767 = vpop.f32.mrf.mxu0
    %v768 = vadd.f32 0.0, %v767
    %v769 = vpop.f32.mrf.mxu0
    %v770 = vpop.f32.mrf.mxu0
    %v771 = vadd.f32 0.0, %v770
    %v772 = vpop.f32.mrf.mxu0
    %773 = vmatprep.mubr.bf16.mxu0 0
    %774 = vmatmul.mubr.bf16.gmra.mxu0 %v625
    %v775 = vpop.f32.mrf.mxu0
    %v776 = vadd.f32 0.0, %v775
    %v777 = vpop.f32.mrf.mxu0
    %v778 = vpop.f32.mrf.mxu0
    %v779 = vadd.f32 0.0, %v778
    %v780 = vpop.f32.mrf.mxu0
    %781 = vmatprep.mubr.bf16.mxu0 0
    %782 = vmatmul.mubr.bf16.gmra.mxu0 %v626
    %v783 = vpop.f32.mrf.mxu0
    %v784 = vadd.f32 0.0, %v783
    %v785 = vpop.f32.mrf.mxu0
    %v786 = vpop.f32.mrf.mxu0
    %v787 = vadd.f32 0.0, %v786
    %v788 = vpop.f32.mrf.mxu0
    %789 = vmatprep.mubr.bf16.mxu0 0
    %790 = vmatmul.mubr.bf16.gmra.mxu0 %v627
    %v791 = vpop.f32.mrf.mxu0
    %v792 = vadd.f32 0.0, %v791
    %v793 = vpop.f32.mrf.mxu0
    %v794 = vpop.f32.mrf.mxu0
    %v795 = vadd.f32 0.0, %v794
    %v796 = vpop.f32.mrf.mxu0
    %797 = vmatprep.mubr.bf16.mxu0 0
    %798 = vmatmul.mubr.bf16.gmra.mxu0 %v628
    %v799 = vpop.f32.mrf.mxu0
    %v800 = vadd.f32 0.0, %v799
    %v801 = vpop.f32.mrf.mxu0
    %v802 = vpop.f32.mrf.mxu0
    %v803 = vadd.f32 0.0, %v802
    %v804 = vpop.f32.mrf.mxu0
    %805 = vmatprep.mubr.bf16.mxu0 0
    %806 = vmatmul.mubr.bf16.gmra.mxu0 %v629
    %v807 = vpop.f32.mrf.mxu0
    %v808 = vadd.f32 0.0, %v807
    %v809 = vpop.f32.mrf.mxu0
    %v810 = vpop.f32.mrf.mxu0
    %v811 = vadd.f32 0.0, %v810
    %v812 = vpop.f32.mrf.mxu0
    %813 = vmatprep.mubr.bf16.mxu0 0
    %814 = vmatmul.mubr.bf16.gmra.mxu0 %v630
    %v815 = vpop.f32.mrf.mxu0
    %v816 = vadd.f32 0.0, %v815
    %v817 = vpop.f32.mrf.mxu0
    %v818 = vpop.f32.mrf.mxu0
    %v819 = vadd.f32 0.0, %v818
    %v820 = vpop.f32.mrf.mxu0
    %821 = vmatprep.mubr.bf16.mxu0 0
    %822 = vmatmul.mubr.bf16.gmra.mxu0 %v631
    %v823 = vpop.f32.mrf.mxu0
    %v824 = vadd.f32 0.0, %v823
    %v825 = vpop.f32.mrf.mxu0
    %v826 = vpop.f32.mrf.mxu0
    %v827 = vadd.f32 0.0, %v826
    %v828 = vpop.f32.mrf.mxu0
    %829 = vmatprep.mubr.bf16.mxu0 0
    %830 = vmatmul.mubr.bf16.gmra.mxu0 %v632
    %v831 = vpop.f32.mrf.mxu0
    %v832 = vadd.f32 0.0, %v831
    %v833 = vpop.f32.mrf.mxu0
    %v834 = vpop.f32.mrf.mxu0
    %v835 = vadd.f32 0.0, %v834
    %v836 = vpop.f32.mrf.mxu0
    %837 = vmatprep.mubr.bf16.mxu0 0
    %838 = vmatmul.mubr.bf16.gmra.mxu0 %v633
    %v839 = vpop.f32.mrf.mxu0
    %v840 = vadd.f32 0.0, %v839
    %v841 = vpop.f32.mrf.mxu0
    %v842 = vpop.f32.mrf.mxu0
    %v843 = vadd.f32 0.0, %v842
    %v844 = vpop.f32.mrf.mxu0
    %845 = vmatprep.mubr.bf16.mxu0 0
    %846 = vmatmul.mubr.bf16.gmra.mxu0 %v634
    %v847 = vpop.f32.mrf.mxu0
    %v848 = vadd.f32 0.0, %v847
    %v849 = vpop.f32.mrf.mxu0
    %v850 = vpop.f32.mrf.mxu0
    %v851 = vadd.f32 0.0, %v850
    %v852 = vpop.f32.mrf.mxu0
    %853 = vmatprep.mubr.bf16.mxu0 0
    %854 = vmatmul.mubr.bf16.gmra.mxu0 %v635
    %v855 = vpop.f32.mrf.mxu0
    %v856 = vadd.f32 0.0, %v855
    %v857 = vpop.f32.mrf.mxu0
    %v858 = vpop.f32.mrf.mxu0
    %v859 = vadd.f32 0.0, %v858
    %v860 = vpop.f32.mrf.mxu0
    %861 = vdwg.mxu0
    %v862 = vmax.f32 %v736, 0.0
    %v863 = vmax.f32 %v739, 0.0
    %v864 = vmax.f32 %v744, 0.0
    %v865 = vmax.f32 %v747, 0.0
    %v866 = vmax.f32 %v752, 0.0
    %v867 = vmax.f32 %v755, 0.0
    %v868 = vmax.f32 %v760, 0.0
    %v869 = vmax.f32 %v763, 0.0
    %v870 = vmax.f32 %v768, 0.0
    %v871 = vmax.f32 %v771, 0.0
    %v872 = vmax.f32 %v776, 0.0
    %v873 = vmax.f32 %v779, 0.0
    %v874 = vmax.f32 %v784, 0.0
    %v875 = vmax.f32 %v787, 0.0
    %v876 = vmax.f32 %v792, 0.0
    %v877 = vmax.f32 %v795, 0.0
    %v878 = vmax.f32 %v800, 0.0
    %v879 = vmax.f32 %v803, 0.0
    %v880 = vmax.f32 %v808, 0.0
    %v881 = vmax.f32 %v811, 0.0
    %v882 = vmax.f32 %v816, 0.0
    %v883 = vmax.f32 %v819, 0.0
    %v884 = vmax.f32 %v824, 0.0
    %v885 = vmax.f32 %v827, 0.0
    %v886 = vmax.f32 %v832, 0.0
    %v887 = vmax.f32 %v835, 0.0
    %v888 = vmax.f32 %v840, 0.0
    %v889 = vmax.f32 %v843, 0.0
    %v890 = vmax.f32 %v848, 0.0
    %v891 = vmax.f32 %v851, 0.0
    %v892 = vmax.f32 %v856, 0.0
    %v893 = vmax.f32 %v859, 0.0
    %v894 = vpack.c.bf16 %v863, %v862
    %v895 = vpack.c.bf16 %v865, %v864
    %v896 = vpack.c.bf16 %v867, %v866
    %v897 = vpack.c.bf16 %v869, %v868
    %v898 = vpack.c.bf16 %v871, %v870
    %v899 = vpack.c.bf16 %v873, %v872
    %v900 = vpack.c.bf16 %v875, %v874
    %v901 = vpack.c.bf16 %v877, %v876
    %v902 = vpack.c.bf16 %v879, %v878
    %v903 = vpack.c.bf16 %v881, %v880
    %v904 = vpack.c.bf16 %v883, %v882
    %v905 = vpack.c.bf16 %v885, %v884
    %v906 = vpack.c.bf16 %v887, %v886
    %v907 = vpack.c.bf16 %v889, %v888
    %v908 = vpack.c.bf16 %v891, %v890
    %v909 = vpack.c.bf16 %v893, %v892
    %s910 = scalar_lea.vmem [#allocation5], 192
    %v911 = vld [vmem:[%s910] sm:$0xf]
    %v912 = vld [vmem:[%s910 + $0x4] sm:$0xf]
    %v913 = vld [vmem:[%s910 + $0x8] sm:$0xf]
    %v914 = vld [vmem:[%s910 + $0xc] sm:$0xf]
    %v915 = vld [vmem:[%s910 + $0x10] sm:$0xf]
    %v916 = vld [vmem:[%s910 + $0x14] sm:$0xf]
    %v917 = vld [vmem:[%s910 + $0x18] sm:$0xf]
    %v918 = vld [vmem:[%s910 + $0x1c] sm:$0xf]
    %v919 = vld [vmem:[%s910 + $0x20] sm:$0xf]
    %v920 = vld [vmem:[%s910 + $0x24] sm:$0xf]
    %v921 = vld [vmem:[%s910 + $0x28] sm:$0xf]
    %v922 = vld [vmem:[%s910 + $0x2c] sm:$0xf]
    %v923 = vld [vmem:[%s910 + $0x30] sm:$0xf]
    %v924 = vld [vmem:[%s910 + $0x34] sm:$0xf]
    %v925 = vld [vmem:[%s910 + $0x38] sm:$0xf]
    %v926 = vld [vmem:[%s910 + $0x3c] sm:$0xf]
    %v943 = vunpack.c.l.b16 %v911
    %v944 = vunpack.c.l.b16 %v912
    %v945 = vunpack.c.l.b16 %v913
    %v946 = vunpack.c.l.b16 %v914
    %v947 = vunpack.c.l.b16 %v915
    %v948 = vunpack.c.l.b16 %v916
    %v949 = vunpack.c.l.b16 %v917
    %v950 = vunpack.c.l.b16 %v918
    %v951 = vunpack.c.l.b16 %v919
    %v952 = vunpack.c.l.b16 %v920
    %v953 = vunpack.c.l.b16 %v921
    %v954 = vunpack.c.l.b16 %v922
    %v955 = vunpack.c.l.b16 %v923
    %v956 = vunpack.c.l.b16 %v924
    %v957 = vunpack.c.l.b16 %v925
    %v958 = vunpack.c.l.b16 %v926
    %v959 = vpack.c.b16 %v944, %v943
    %v960 = vpack.c.b16 %v946, %v945
    %v961 = vpack.c.b16 %v948, %v947
    %v962 = vpack.c.b16 %v950, %v949
    %v963 = vpack.c.b16 %v952, %v951
    %v964 = vpack.c.b16 %v954, %v953
    %v965 = vpack.c.b16 %v956, %v955
    %v966 = vpack.c.b16 %v958, %v957
    %975 = vmatprep.subr.bf16.mxu0 0
    %976 = vmatpush1.bf16.msra.mxu0 %v966
    %977 = vmatprep.subr.bf16.mxu0 0
    %978 = vmatpush1.bf16.msra.mxu0 %v965
    %979 = vmatprep.subr.bf16.mxu0 0
    %980 = vmatpush1.bf16.msra.mxu0 %v964
    %981 = vmatprep.subr.bf16.mxu0 0
    %982 = vmatpush1.bf16.msra.mxu0 %v963
    %983 = vmatprep.subr.bf16.mxu0 0
    %984 = vmatpush1.bf16.msra.mxu0 %v962
    %985 = vmatprep.subr.bf16.mxu0 0
    %986 = vmatpush1.bf16.msra.mxu0 %v961
    %987 = vmatprep.subr.bf16.mxu0 0
    %988 = vmatpush1.bf16.msra.mxu0 %v960
    %989 = vmatprep.subr.bf16.mxu0 0
    %990 = vmatpush1.bf16.msra.mxu0 %v959
    %991 = vmatprep.subr.bf16.mxu0 0
    %992 = vmatpush2.bf16.msra.mxu0 0
    %993 = vmatprep.subr.bf16.mxu0 0
    %994 = vmatpush2.bf16.msra.mxu0 0
    %995 = vmatprep.subr.bf16.mxu0 0
    %996 = vmatpush2.bf16.msra.mxu0 0
    %997 = vmatprep.subr.bf16.mxu0 0
    %998 = vmatpush2.bf16.msra.mxu0 0
    %999 = vmatprep.subr.bf16.mxu0 0
    %1000 = vmatpush2.bf16.msra.mxu0 0
    %1001 = vmatprep.subr.bf16.mxu0 0
    %1002 = vmatpush2.bf16.msra.mxu0 0
    %1003 = vmatprep.subr.bf16.mxu0 0
    %1004 = vmatpush2.bf16.msra.mxu0 0
    %1005 = vmatprep.subr.bf16.mxu0 0
    %1006 = vmatpush2.bf16.msra.mxu0 0
    %1007 = vmatprep.mubr.bf16.mxu0 0
    %1008 = vmatmul.mubr.bf16.gmra.mxu0 %v894
    %v1009 = vpop.f32.mrf.mxu0
    %v1010 = vadd.f32 0.0, %v1009
    %v1011 = vpop.f32.mrf.mxu0
    %v1012 = vpop.f32.mrf.mxu0
    %v1013 = vadd.f32 0.0, %v1012
    %v1014 = vpop.f32.mrf.mxu0
    %1015 = vmatprep.mubr.bf16.mxu0 0
    %1016 = vmatmul.mubr.bf16.gmra.mxu0 %v895
    %v1017 = vpop.f32.mrf.mxu0
    %v1018 = vadd.f32 0.0, %v1017
    %v1019 = vpop.f32.mrf.mxu0
    %v1020 = vpop.f32.mrf.mxu0
    %v1021 = vadd.f32 0.0, %v1020
    %v1022 = vpop.f32.mrf.mxu0
    %1023 = vmatprep.mubr.bf16.mxu0 0
    %1024 = vmatmul.mubr.bf16.gmra.mxu0 %v896
    %v1025 = vpop.f32.mrf.mxu0
    %v1026 = vadd.f32 0.0, %v1025
    %v1027 = vpop.f32.mrf.mxu0
    %v1028 = vpop.f32.mrf.mxu0
    %v1029 = vadd.f32 0.0, %v1028
    %v1030 = vpop.f32.mrf.mxu0
    %1031 = vmatprep.mubr.bf16.mxu0 0
    %1032 = vmatmul.mubr.bf16.gmra.mxu0 %v897
    %v1033 = vpop.f32.mrf.mxu0
    %v1034 = vadd.f32 0.0, %v1033
    %v1035 = vpop.f32.mrf.mxu0
    %v1036 = vpop.f32.mrf.mxu0
    %v1037 = vadd.f32 0.0, %v1036
    %v1038 = vpop.f32.mrf.mxu0
    %1039 = vmatprep.mubr.bf16.mxu0 0
    %1040 = vmatmul.mubr.bf16.gmra.mxu0 %v898
    %v1041 = vpop.f32.mrf.mxu0
    %v1042 = vadd.f32 0.0, %v1041
    %v1043 = vpop.f32.mrf.mxu0
    %v1044 = vpop.f32.mrf.mxu0
    %v1045 = vadd.f32 0.0, %v1044
    %v1046 = vpop.f32.mrf.mxu0
    %1047 = vmatprep.mubr.bf16.mxu0 0
    %1048 = vmatmul.mubr.bf16.gmra.mxu0 %v899
    %v1049 = vpop.f32.mrf.mxu0
    %v1050 = vadd.f32 0.0, %v1049
    %v1051 = vpop.f32.mrf.mxu0
    %v1052 = vpop.f32.mrf.mxu0
    %v1053 = vadd.f32 0.0, %v1052
    %v1054 = vpop.f32.mrf.mxu0
    %1055 = vmatprep.mubr.bf16.mxu0 0
    %1056 = vmatmul.mubr.bf16.gmra.mxu0 %v900
    %v1057 = vpop.f32.mrf.mxu0
    %v1058 = vadd.f32 0.0, %v1057
    %v1059 = vpop.f32.mrf.mxu0
    %v1060 = vpop.f32.mrf.mxu0
    %v1061 = vadd.f32 0.0, %v1060
    %v1062 = vpop.f32.mrf.mxu0
    %1063 = vmatprep.mubr.bf16.mxu0 0
    %1064 = vmatmul.mubr.bf16.gmra.mxu0 %v901
    %v1065 = vpop.f32.mrf.mxu0
    %v1066 = vadd.f32 0.0, %v1065
    %v1067 = vpop.f32.mrf.mxu0
    %v1068 = vpop.f32.mrf.mxu0
    %v1069 = vadd.f32 0.0, %v1068
    %v1070 = vpop.f32.mrf.mxu0
    %1071 = vmatprep.mubr.bf16.mxu0 0
    %1072 = vmatmul.mubr.bf16.gmra.mxu0 %v902
    %v1073 = vpop.f32.mrf.mxu0
    %v1074 = vadd.f32 0.0, %v1073
    %v1075 = vpop.f32.mrf.mxu0
    %v1076 = vpop.f32.mrf.mxu0
    %v1077 = vadd.f32 0.0, %v1076
    %v1078 = vpop.f32.mrf.mxu0
    %1079 = vmatprep.mubr.bf16.mxu0 0
    %1080 = vmatmul.mubr.bf16.gmra.mxu0 %v903
    %v1081 = vpop.f32.mrf.mxu0
    %v1082 = vadd.f32 0.0, %v1081
    %v1083 = vpop.f32.mrf.mxu0
    %v1084 = vpop.f32.mrf.mxu0
    %v1085 = vadd.f32 0.0, %v1084
    %v1086 = vpop.f32.mrf.mxu0
    %1087 = vmatprep.mubr.bf16.mxu0 0
    %1088 = vmatmul.mubr.bf16.gmra.mxu0 %v904
    %v1089 = vpop.f32.mrf.mxu0
    %v1090 = vadd.f32 0.0, %v1089
    %v1091 = vpop.f32.mrf.mxu0
    %v1092 = vpop.f32.mrf.mxu0
    %v1093 = vadd.f32 0.0, %v1092
    %v1094 = vpop.f32.mrf.mxu0
    %1095 = vmatprep.mubr.bf16.mxu0 0
    %1096 = vmatmul.mubr.bf16.gmra.mxu0 %v905
    %v1097 = vpop.f32.mrf.mxu0
    %v1098 = vadd.f32 0.0, %v1097
    %v1099 = vpop.f32.mrf.mxu0
    %v1100 = vpop.f32.mrf.mxu0
    %v1101 = vadd.f32 0.0, %v1100
    %v1102 = vpop.f32.mrf.mxu0
    %1103 = vmatprep.mubr.bf16.mxu0 0
    %1104 = vmatmul.mubr.bf16.gmra.mxu0 %v906
    %v1105 = vpop.f32.mrf.mxu0
    %v1106 = vadd.f32 0.0, %v1105
    %v1107 = vpop.f32.mrf.mxu0
    %v1108 = vpop.f32.mrf.mxu0
    %v1109 = vadd.f32 0.0, %v1108
    %v1110 = vpop.f32.mrf.mxu0
    %1111 = vmatprep.mubr.bf16.mxu0 0
    %1112 = vmatmul.mubr.bf16.gmra.mxu0 %v907
    %v1113 = vpop.f32.mrf.mxu0
    %v1114 = vadd.f32 0.0, %v1113
    %v1115 = vpop.f32.mrf.mxu0
    %v1116 = vpop.f32.mrf.mxu0
    %v1117 = vadd.f32 0.0, %v1116
    %v1118 = vpop.f32.mrf.mxu0
    %1119 = vmatprep.mubr.bf16.mxu0 0
    %1120 = vmatmul.mubr.bf16.gmra.mxu0 %v908
    %v1121 = vpop.f32.mrf.mxu0
    %v1122 = vadd.f32 0.0, %v1121
    %v1123 = vpop.f32.mrf.mxu0
    %v1124 = vpop.f32.mrf.mxu0
    %v1125 = vadd.f32 0.0, %v1124
    %v1126 = vpop.f32.mrf.mxu0
    %1127 = vmatprep.mubr.bf16.mxu0 0
    %1128 = vmatmul.mubr.bf16.gmra.mxu0 %v909
    %v1129 = vpop.f32.mrf.mxu0
    %v1130 = vadd.f32 0.0, %v1129
    %v1131 = vpop.f32.mrf.mxu0
    %v1132 = vpop.f32.mrf.mxu0
    %v1133 = vadd.f32 0.0, %v1132
    %v1134 = vpop.f32.mrf.mxu0
    %1135 = vdwg.mxu0
    %v1136 = vmax.f32 %v1010, 0.0
    %v1137 = vmax.f32 %v1013, 0.0
    %v1138 = vmax.f32 %v1018, 0.0
    %v1139 = vmax.f32 %v1021, 0.0
    %v1140 = vmax.f32 %v1026, 0.0
    %v1141 = vmax.f32 %v1029, 0.0
    %v1142 = vmax.f32 %v1034, 0.0
    %v1143 = vmax.f32 %v1037, 0.0
    %v1144 = vmax.f32 %v1042, 0.0
    %v1145 = vmax.f32 %v1045, 0.0
    %v1146 = vmax.f32 %v1050, 0.0
    %v1147 = vmax.f32 %v1053, 0.0
    %v1148 = vmax.f32 %v1058, 0.0
    %v1149 = vmax.f32 %v1061, 0.0
    %v1150 = vmax.f32 %v1066, 0.0
    %v1151 = vmax.f32 %v1069, 0.0
    %v1152 = vmax.f32 %v1074, 0.0
    %v1153 = vmax.f32 %v1077, 0.0
    %v1154 = vmax.f32 %v1082, 0.0
    %v1155 = vmax.f32 %v1085, 0.0
    %v1156 = vmax.f32 %v1090, 0.0
    %v1157 = vmax.f32 %v1093, 0.0
    %v1158 = vmax.f32 %v1098, 0.0
    %v1159 = vmax.f32 %v1101, 0.0
    %v1160 = vmax.f32 %v1106, 0.0
    %v1161 = vmax.f32 %v1109, 0.0
    %v1162 = vmax.f32 %v1114, 0.0
    %v1163 = vmax.f32 %v1117, 0.0
    %v1164 = vmax.f32 %v1122, 0.0
    %v1165 = vmax.f32 %v1125, 0.0
    %v1166 = vmax.f32 %v1130, 0.0
    %v1167 = vmax.f32 %v1133, 0.0
    %v1168 = vpack.c.bf16 %v1137, %v1136
    %v1169 = vpack.c.bf16 %v1139, %v1138
    %v1170 = vpack.c.bf16 %v1141, %v1140
    %v1171 = vpack.c.bf16 %v1143, %v1142
    %v1172 = vpack.c.bf16 %v1145, %v1144
    %v1173 = vpack.c.bf16 %v1147, %v1146
    %v1174 = vpack.c.bf16 %v1149, %v1148
    %v1175 = vpack.c.bf16 %v1151, %v1150
    %v1176 = vpack.c.bf16 %v1153, %v1152
    %v1177 = vpack.c.bf16 %v1155, %v1154
    %v1178 = vpack.c.bf16 %v1157, %v1156
    %v1179 = vpack.c.bf16 %v1159, %v1158
    %v1180 = vpack.c.bf16 %v1161, %v1160
    %v1181 = vpack.c.bf16 %v1163, %v1162
    %v1182 = vpack.c.bf16 %v1165, %v1164
    %v1183 = vpack.c.bf16 %v1167, %v1166
    %s1184 = scalar_lea.vmem [#allocation5], 256
    %v1185 = vld [vmem:[%s1184] sm:$0xf]
    %v1186 = vld [vmem:[%s1184 + $0x4] sm:$0xf]
    %v1187 = vld [vmem:[%s1184 + $0x8] sm:$0xf]
    %v1188 = vld [vmem:[%s1184 + $0xc] sm:$0xf]
    %v1189 = vld [vmem:[%s1184 + $0x10] sm:$0xf]
    %v1190 = vld [vmem:[%s1184 + $0x14] sm:$0xf]
    %v1191 = vld [vmem:[%s1184 + $0x18] sm:$0xf]
    %v1192 = vld [vmem:[%s1184 + $0x1c] sm:$0xf]
    %v1193 = vld [vmem:[%s1184 + $0x20] sm:$0xf]
    %v1194 = vld [vmem:[%s1184 + $0x24] sm:$0xf]
    %v1195 = vld [vmem:[%s1184 + $0x28] sm:$0xf]
    %v1196 = vld [vmem:[%s1184 + $0x2c] sm:$0xf]
    %v1197 = vld [vmem:[%s1184 + $0x30] sm:$0xf]
    %v1198 = vld [vmem:[%s1184 + $0x34] sm:$0xf]
    %v1199 = vld [vmem:[%s1184 + $0x38] sm:$0xf]
    %v1200 = vld [vmem:[%s1184 + $0x3c] sm:$0xf]
    %v1217 = vunpack.c.l.b16 %v1185
    %v1218 = vunpack.c.l.b16 %v1186
    %v1219 = vunpack.c.l.b16 %v1187
    %v1220 = vunpack.c.l.b16 %v1188
    %v1221 = vunpack.c.l.b16 %v1189
    %v1222 = vunpack.c.l.b16 %v1190
    %v1223 = vunpack.c.l.b16 %v1191
    %v1224 = vunpack.c.l.b16 %v1192
    %v1225 = vunpack.c.l.b16 %v1193
    %v1226 = vunpack.c.l.b16 %v1194
    %v1227 = vunpack.c.l.b16 %v1195
    %v1228 = vunpack.c.l.b16 %v1196
    %v1229 = vunpack.c.l.b16 %v1197
    %v1230 = vunpack.c.l.b16 %v1198
    %v1231 = vunpack.c.l.b16 %v1199
    %v1232 = vunpack.c.l.b16 %v1200
    %v1233 = vpack.c.b16 %v1218, %v1217
    %v1234 = vpack.c.b16 %v1220, %v1219
    %v1235 = vpack.c.b16 %v1222, %v1221
    %v1236 = vpack.c.b16 %v1224, %v1223
    %v1237 = vpack.c.b16 %v1226, %v1225
    %v1238 = vpack.c.b16 %v1228, %v1227
    %v1239 = vpack.c.b16 %v1230, %v1229
    %v1240 = vpack.c.b16 %v1232, %v1231
    %1249 = vmatprep.subr.bf16.mxu0 0
    %1250 = vmatpush1.bf16.msra.mxu0 %v1240
    %1251 = vmatprep.subr.bf16.mxu0 0
    %1252 = vmatpush1.bf16.msra.mxu0 %v1239
    %1253 = vmatprep.subr.bf16.mxu0 0
    %1254 = vmatpush1.bf16.msra.mxu0 %v1238
    %1255 = vmatprep.subr.bf16.mxu0 0
    %1256 = vmatpush1.bf16.msra.mxu0 %v1237
    %1257 = vmatprep.subr.bf16.mxu0 0
    %1258 = vmatpush1.bf16.msra.mxu0 %v1236
    %1259 = vmatprep.subr.bf16.mxu0 0
    %1260 = vmatpush1.bf16.msra.mxu0 %v1235
    %1261 = vmatprep.subr.bf16.mxu0 0
    %1262 = vmatpush1.bf16.msra.mxu0 %v1234
    %1263 = vmatprep.subr.bf16.mxu0 0
    %1264 = vmatpush1.bf16.msra.mxu0 %v1233
    %1265 = vmatprep.subr.bf16.mxu0 0
    %1266 = vmatpush2.bf16.msra.mxu0 0
    %1267 = vmatprep.subr.bf16.mxu0 0
    %1268 = vmatpush2.bf16.msra.mxu0 0
    %1269 = vmatprep.subr.bf16.mxu0 0
    %1270 = vmatpush2.bf16.msra.mxu0 0
    %1271 = vmatprep.subr.bf16.mxu0 0
    %1272 = vmatpush2.bf16.msra.mxu0 0
    %1273 = vmatprep.subr.bf16.mxu0 0
    %1274 = vmatpush2.bf16.msra.mxu0 0
    %1275 = vmatprep.subr.bf16.mxu0 0
    %1276 = vmatpush2.bf16.msra.mxu0 0
    %1277 = vmatprep.subr.bf16.mxu0 0
    %1278 = vmatpush2.bf16.msra.mxu0 0
    %1279 = vmatprep.subr.bf16.mxu0 0
    %1280 = vmatpush2.bf16.msra.mxu0 0
    %1281 = vmatprep.mubr.bf16.mxu0 0
    %1282 = vmatmul.mubr.bf16.gmra.mxu0 %v1168
    %v1283 = vpop.f32.mrf.mxu0
    %v1284 = vadd.f32 0.0, %v1283
    %v1285 = vpop.f32.mrf.mxu0
    %v1286 = vpop.f32.mrf.mxu0
    %v1287 = vadd.f32 0.0, %v1286
    %v1288 = vpop.f32.mrf.mxu0
    %1289 = vmatprep.mubr.bf16.mxu0 0
    %1290 = vmatmul.mubr.bf16.gmra.mxu0 %v1169
    %v1291 = vpop.f32.mrf.mxu0
    %v1292 = vadd.f32 0.0, %v1291
    %v1293 = vpop.f32.mrf.mxu0
    %v1294 = vpop.f32.mrf.mxu0
    %v1295 = vadd.f32 0.0, %v1294
    %v1296 = vpop.f32.mrf.mxu0
    %1297 = vmatprep.mubr.bf16.mxu0 0
    %1298 = vmatmul.mubr.bf16.gmra.mxu0 %v1170
    %v1299 = vpop.f32.mrf.mxu0
    %v1300 = vadd.f32 0.0, %v1299
    %v1301 = vpop.f32.mrf.mxu0
    %v1302 = vpop.f32.mrf.mxu0
    %v1303 = vadd.f32 0.0, %v1302
    %v1304 = vpop.f32.mrf.mxu0
    %1305 = vmatprep.mubr.bf16.mxu0 0
    %1306 = vmatmul.mubr.bf16.gmra.mxu0 %v1171
    %v1307 = vpop.f32.mrf.mxu0
    %v1308 = vadd.f32 0.0, %v1307
    %v1309 = vpop.f32.mrf.mxu0
    %v1310 = vpop.f32.mrf.mxu0
    %v1311 = vadd.f32 0.0, %v1310
    %v1312 = vpop.f32.mrf.mxu0
    %1313 = vmatprep.mubr.bf16.mxu0 0
    %1314 = vmatmul.mubr.bf16.gmra.mxu0 %v1172
    %v1315 = vpop.f32.mrf.mxu0
    %v1316 = vadd.f32 0.0, %v1315
    %v1317 = vpop.f32.mrf.mxu0
    %v1318 = vpop.f32.mrf.mxu0
    %v1319 = vadd.f32 0.0, %v1318
    %v1320 = vpop.f32.mrf.mxu0
    %1321 = vmatprep.mubr.bf16.mxu0 0
    %1322 = vmatmul.mubr.bf16.gmra.mxu0 %v1173
    %v1323 = vpop.f32.mrf.mxu0
    %v1324 = vadd.f32 0.0, %v1323
    %v1325 = vpop.f32.mrf.mxu0
    %v1326 = vpop.f32.mrf.mxu0
    %v1327 = vadd.f32 0.0, %v1326
    %v1328 = vpop.f32.mrf.mxu0
    %1329 = vmatprep.mubr.bf16.mxu0 0
    %1330 = vmatmul.mubr.bf16.gmra.mxu0 %v1174
    %v1331 = vpop.f32.mrf.mxu0
    %v1332 = vadd.f32 0.0, %v1331
    %v1333 = vpop.f32.mrf.mxu0
    %v1334 = vpop.f32.mrf.mxu0
    %v1335 = vadd.f32 0.0, %v1334
    %v1336 = vpop.f32.mrf.mxu0
    %1337 = vmatprep.mubr.bf16.mxu0 0
    %1338 = vmatmul.mubr.bf16.gmra.mxu0 %v1175
    %v1339 = vpop.f32.mrf.mxu0
    %v1340 = vadd.f32 0.0, %v1339
    %v1341 = vpop.f32.mrf.mxu0
    %v1342 = vpop.f32.mrf.mxu0
    %v1343 = vadd.f32 0.0, %v1342
    %v1344 = vpop.f32.mrf.mxu0
    %1345 = vmatprep.mubr.bf16.mxu0 0
    %1346 = vmatmul.mubr.bf16.gmra.mxu0 %v1176
    %v1347 = vpop.f32.mrf.mxu0
    %v1348 = vadd.f32 0.0, %v1347
    %v1349 = vpop.f32.mrf.mxu0
    %v1350 = vpop.f32.mrf.mxu0
    %v1351 = vadd.f32 0.0, %v1350
    %v1352 = vpop.f32.mrf.mxu0
    %1353 = vmatprep.mubr.bf16.mxu0 0
    %1354 = vmatmul.mubr.bf16.gmra.mxu0 %v1177
    %v1355 = vpop.f32.mrf.mxu0
    %v1356 = vadd.f32 0.0, %v1355
    %v1357 = vpop.f32.mrf.mxu0
    %v1358 = vpop.f32.mrf.mxu0
    %v1359 = vadd.f32 0.0, %v1358
    %v1360 = vpop.f32.mrf.mxu0
    %1361 = vmatprep.mubr.bf16.mxu0 0
    %1362 = vmatmul.mubr.bf16.gmra.mxu0 %v1178
    %v1363 = vpop.f32.mrf.mxu0
    %v1364 = vadd.f32 0.0, %v1363
    %v1365 = vpop.f32.mrf.mxu0
    %v1366 = vpop.f32.mrf.mxu0
    %v1367 = vadd.f32 0.0, %v1366
    %v1368 = vpop.f32.mrf.mxu0
    %1369 = vmatprep.mubr.bf16.mxu0 0
    %1370 = vmatmul.mubr.bf16.gmra.mxu0 %v1179
    %v1371 = vpop.f32.mrf.mxu0
    %v1372 = vadd.f32 0.0, %v1371
    %v1373 = vpop.f32.mrf.mxu0
    %v1374 = vpop.f32.mrf.mxu0
    %v1375 = vadd.f32 0.0, %v1374
    %v1376 = vpop.f32.mrf.mxu0
    %1377 = vmatprep.mubr.bf16.mxu0 0
    %1378 = vmatmul.mubr.bf16.gmra.mxu0 %v1180
    %v1379 = vpop.f32.mrf.mxu0
    %v1380 = vadd.f32 0.0, %v1379
    %v1381 = vpop.f32.mrf.mxu0
    %v1382 = vpop.f32.mrf.mxu0
    %v1383 = vadd.f32 0.0, %v1382
    %v1384 = vpop.f32.mrf.mxu0
    %1385 = vmatprep.mubr.bf16.mxu0 0
    %1386 = vmatmul.mubr.bf16.gmra.mxu0 %v1181
    %v1387 = vpop.f32.mrf.mxu0
    %v1388 = vadd.f32 0.0, %v1387
    %v1389 = vpop.f32.mrf.mxu0
    %v1390 = vpop.f32.mrf.mxu0
    %v1391 = vadd.f32 0.0, %v1390
    %v1392 = vpop.f32.mrf.mxu0
    %1393 = vmatprep.mubr.bf16.mxu0 0
    %1394 = vmatmul.mubr.bf16.gmra.mxu0 %v1182
    %v1395 = vpop.f32.mrf.mxu0
    %v1396 = vadd.f32 0.0, %v1395
    %v1397 = vpop.f32.mrf.mxu0
    %v1398 = vpop.f32.mrf.mxu0
    %v1399 = vadd.f32 0.0, %v1398
    %v1400 = vpop.f32.mrf.mxu0
    %1401 = vmatprep.mubr.bf16.mxu0 0
    %1402 = vmatmul.mubr.bf16.gmra.mxu0 %v1183
    %v1403 = vpop.f32.mrf.mxu0
    %v1404 = vadd.f32 0.0, %v1403
    %v1405 = vpop.f32.mrf.mxu0
    %v1406 = vpop.f32.mrf.mxu0
    %v1407 = vadd.f32 0.0, %v1406
    %v1408 = vpop.f32.mrf.mxu0
    %1409 = vdwg.mxu0
    %1410 = vst [vmem:[#allocation7] sm:$0xff] %v1284
    %1411 = vst [vmem:[#allocation7 + $0x8] sm:$0xff] %v1287
    %1412 = vst [vmem:[#allocation7 + $0x10] sm:$0xff] %v1292
    %1413 = vst [vmem:[#allocation7 + $0x18] sm:$0xff] %v1295
    %1414 = vst [vmem:[#allocation7 + $0x20] sm:$0xff] %v1300
    %1415 = vst [vmem:[#allocation7 + $0x28] sm:$0xff] %v1303
    %1416 = vst [vmem:[#allocation7 + $0x30] sm:$0xff] %v1308
    %1417 = vst [vmem:[#allocation7 + $0x38] sm:$0xff] %v1311
    %1418 = vst [vmem:[#allocation7 + $0x40] sm:$0xff] %v1316
    %1419 = vst [vmem:[#allocation7 + $0x48] sm:$0xff] %v1319
    %1420 = vst [vmem:[#allocation7 + $0x50] sm:$0xff] %v1324
    %1421 = vst [vmem:[#allocation7 + $0x58] sm:$0xff] %v1327
    %1422 = vst [vmem:[#allocation7 + $0x60] sm:$0xff] %v1332
    %1423 = vst [vmem:[#allocation7 + $0x68] sm:$0xff] %v1335
    %1424 = vst [vmem:[#allocation7 + $0x70] sm:$0xff] %v1340
    %1425 = vst [vmem:[#allocation7 + $0x78] sm:$0xff] %v1343
    %1426 = vst [vmem:[#allocation7 + $0x80] sm:$0xff] %v1348
    %1427 = vst [vmem:[#allocation7 + $0x88] sm:$0xff] %v1351
    %1428 = vst [vmem:[#allocation7 + $0x90] sm:$0xff] %v1356
    %1429 = vst [vmem:[#allocation7 + $0x98] sm:$0xff] %v1359
    %1430 = vst [vmem:[#allocation7 + $0xa0] sm:$0xff] %v1364
    %1431 = vst [vmem:[#allocation7 + $0xa8] sm:$0xff] %v1367
    %1432 = vst [vmem:[#allocation7 + $0xb0] sm:$0xff] %v1372
    %1433 = vst [vmem:[#allocation7 + $0xb8] sm:$0xff] %v1375
    %1434 = vst [vmem:[#allocation7 + $0xc0] sm:$0xff] %v1380
    %1435 = vst [vmem:[#allocation7 + $0xc8] sm:$0xff] %v1383
    %1436 = vst [vmem:[#allocation7 + $0xd0] sm:$0xff] %v1388
    %1437 = vst [vmem:[#allocation7 + $0xd8] sm:$0xff] %v1391
    %1438 = vst [vmem:[#allocation7 + $0xe0] sm:$0xff] %v1396
    %1439 = vst [vmem:[#allocation7 + $0xe8] sm:$0xff] %v1399
    %1440 = vst [vmem:[#allocation7 + $0xf0] sm:$0xff] %v1404
    %1441 = vst [vmem:[#allocation7 + $0xf8] sm:$0xff] %v1407
    // Predicated region
    $region18: #{tpu_custom_call.1} parent=1 // pred_check
      _
    $region19: #{tpu_custom_call.1} parent=1 // pred_check_branch
      %1443 = sbr.rel (0) target = $region21
    $region20: #{tpu_custom_call.1} parent=1 // pred_region
      %s1445 = ssub.s32 4096, 4096
      %1446 = vsyncadd [#allocation4], %s1445
      %s1447 = sshll.u32 [#allocation7], 4
      %s1448 = int_to_ptr.vmem [resolvable:$true] %s1447
      %1453 = dma.vmem_to_hbm [thread:$0]  %s1448, 4096, %s2, [#allocation4], 128, 128, 8
    $region21: #{tpu_custom_call.1} parent=1 // pred_fallthru
      _
    // Predicated region
    $region22: #{tpu_custom_call.1} parent=1 // pred_check
      _
    $region23: #{tpu_custom_call.1} parent=1 // pred_check_branch
      %1455 = sbr.rel (0) target = $region25
    $region24: #{tpu_custom_call.1} parent=1 // pred_region
      %1456 = dma.done [#allocation4], 4096
    $region25: #{tpu_custom_call.1} parent=1 // pred_fallthru
      _
    %1457 = vsyncpa [#allocation3], 1
    %1458 = vsyncpa [#allocation6], 1
    %1459 = vsyncpa [#allocation4], 1

</llo_original>
